<compile_context>
chip_gen: v5e
topology: v5e:2x2
jax: 0.10.0
libtpu: 0.0.40
codegen_flags: <defaults>
</compile_context>

<pallas_src>
import functools

import numpy as np
import jax
import jax.numpy as jnp
from jax.experimental import pallas as pl
from jax.experimental.pallas import tpu as pltpu


def _round_up(x, m):
    return (x + m - 1) // m * m


# --------------------------- fused forward kernel ---------------------------
def _fuse_bottleneck_kernel(ncp,
                            v_ref, w_obs_ref, w1_ref, b1_ref,
                            w_fold_ref, b_heads_ref, out_ref):
    """One batch tile: observation head + folded bottleneck/classifier head.

    v_ref:       (TB, in_ch)      bf16  activations
    w_obs_ref:   (in_ch, ncp)     bf16  classifier_observation weight
    w1_ref:      (in_ch, dim_b)   bf16  bottleneck layer-1 weight
    b1_ref:      (1, dim_b)       f32
    w_fold_ref:  (dim_b, ncp)     bf16  w2 @ w_cls (folded, f32 product -> bf16)
    b_heads_ref: (1, 2*ncp)       f32   [b_obs | b2 @ w_cls + b_cls] packed
    out_ref:     (TB, 2*ncp)      f32   [output_observation | output_representation]
    """
    v = v_ref[...]                                            # bf16

    # output_observation = classifier_observation(v)
    obs = jnp.dot(v, w_obs_ref[...], preferred_element_type=jnp.float32)

    # h = ReLU(v @ w1 + b1)   (first bottleneck layer)
    h = jnp.dot(v, w1_ref[...], preferred_element_type=jnp.float32) + b1_ref[...]
    h = jnp.maximum(h, 0.0).astype(jnp.bfloat16)

    # output_representation = classifier(bottleneck2(h)) = h @ (w2 @ w_cls) + b_fold
    cls = jnp.dot(h, w_fold_ref[...], preferred_element_type=jnp.float32)

    out_ref[:, :ncp] = obs + b_heads_ref[:, :ncp]
    out_ref[:, ncp:] = cls + b_heads_ref[:, ncp:]


def fuse_bottleneck_forward(v, params):
    """Pads batch, tiles it over a 1-D grid with resident weights, splits heads."""
    B, in_ch = v.shape
    nc = params["num_class"]
    ncp = params["ncp"]
    dim_b = params["w1"].shape[1]

    # Batch tile: 256 rows matches the 256-wide MXU on v6e/v7x; small batches
    # collapse to a single full-extent block (multiple of 16 for bf16 sublanes).
    TB = 256
    bp = _round_up(max(B, 1), 16)
    if bp <= TB:
        tb = bp
    else:
        tb = TB
        bp = _round_up(bp, TB)

    vp = v if bp == B else jnp.pad(v, ((0, bp - B), (0, 0)))
    vp = vp.astype(jnp.bfloat16)

    grid = (bp // tb,)

    # VMEM footprint (x2 for double buffering) + headroom, capped below v7x's 64 MiB.
    w_bytes = ((params["w_obs"].size + params["w1"].size + params["w_fold"].size) * 2
               + (params["b1"].size + params["b_heads"].size) * 4)
    tile_bytes = tb * in_ch * 2 + tb * 2 * ncp * 4
    vmem_limit = int(min(max(2 * (w_bytes + tile_bytes) + (8 << 20), 16 << 20), 48 << 20))

    flops = 2 * bp * (in_ch * ncp + in_ch * dim_b + dim_b * ncp)
    bytes_accessed = bp * in_ch * 2 + w_bytes + bp * 2 * ncp * 4
    cost = pl.CostEstimate(flops=flops, transcendentals=0,
                           bytes_accessed=bytes_accessed)

    out = pl.pallas_call(
        functools.partial(_fuse_bottleneck_kernel, ncp),
        out_shape=jax.ShapeDtypeStruct((bp, 2 * ncp), jnp.float32),
        grid=grid,
        in_specs=[
            pl.BlockSpec((tb, in_ch), lambda i: (i, 0)),        # v tile
            pl.BlockSpec((in_ch, ncp), lambda i: (0, 0)),       # w_obs (resident)
            pl.BlockSpec((in_ch, dim_b), lambda i: (0, 0)),     # w1    (resident)
            pl.BlockSpec((1, dim_b), lambda i: (0, 0)),         # b1    (resident)
            pl.BlockSpec((dim_b, ncp), lambda i: (0, 0)),       # w_fold(resident)
            pl.BlockSpec((1, 2 * ncp), lambda i: (0, 0)),       # b_heads
        ],
        out_specs=pl.BlockSpec((tb, 2 * ncp), lambda i: (i, 0)),
        compiler_params=pltpu.CompilerParams(
            dimension_semantics=("parallel",),                  # v7x megacore split
            vmem_limit_bytes=vmem_limit,
        ),
        cost_estimate=cost,
    )(vp, params["w_obs"], params["w1"], params["b1"],
      params["w_fold"], params["b_heads"])

    output_observation = out[:B, :nc]
    output_representation = out[:B, ncp:ncp + nc]
    return output_observation, output_representation


# --------------------------- parameter construction -------------------------
def init_params(key, in_ch, dim_bottleneck, num_class):
    """Parameters matching the PyTorch module's structure.

    Bottleneck layers: uniform(+-1/sqrt(fan_in)) (PyTorch Linear default style).
    Classifier heads : weights_init_classifier -> normal(std=0.001), bias=0.
    The second bottleneck Linear and the classifier are folded in f32
    (w_fold = w2 @ w_cls, b_fold = b2 @ w_cls + b_cls) and stored in bf16;
    the class dimension is zero-padded to a multiple of 128 lanes.
    """
    ncp = _round_up(num_class, 128)
    k1, k1b, k2, k2b, k3, k4 = jax.random.split(key, 6)

    lim1 = 1.0 / np.sqrt(in_ch)
    w1 = jax.random.uniform(k1, (in_ch, dim_bottleneck), jnp.float32, -lim1, lim1)
    b1 = jax.random.uniform(k1b, (1, dim_bottleneck), jnp.float32, -lim1, lim1)

    lim2 = 1.0 / np.sqrt(dim_bottleneck)
    w2 = jax.random.uniform(k2, (dim_bottleneck, in_ch), jnp.float32, -lim2, lim2)
    b2 = jax.random.uniform(k2b, (1, in_ch), jnp.float32, -lim2, lim2)

    w_obs = jax.random.normal(k3, (in_ch, num_class), jnp.float32) * 1e-3
    w_cls = jax.random.normal(k4, (in_ch, num_class), jnp.float32) * 1e-3
    b_obs = jnp.zeros((1, num_class), jnp.float32)   # weights_init_classifier: bias = 0
    b_cls = jnp.zeros((1, num_class), jnp.float32)

    # Exact fold (f32): classifier(Linear2(h)) = h @ (w2 @ w_cls) + (b2 @ w_cls + b_cls)
    w_fold = jnp.dot(w2, w_cls)
    b_fold = jnp.dot(b2, w_cls) + b_cls

    def pad_nc(a):                                   # (..., nc) -> (..., ncp)
        return jnp.pad(a, ((0, 0), (0, ncp - num_class)))

    return {
        "w1": w1.astype(jnp.bfloat16), "b1": b1,
        "w_obs": pad_nc(w_obs).astype(jnp.bfloat16),
        "w_fold": pad_nc(w_fold).astype(jnp.bfloat16),
        "b_heads": jnp.concatenate([pad_nc(b_obs), pad_nc(b_fold)], axis=1),
        # full-precision, unfolded copies for the pure-JAX reference
        "_ref": {"w1": w1, "b1": b1, "w2": w2, "b2": b2,
                 "w_obs": w_obs, "b_obs": b_obs, "w_cls": w_cls, "b_cls": b_cls},
        "num_class": num_class,
        "ncp": ncp,
    }


# --------------------------- pure-JAX reference ------------------------------
def ref_forward(v, params):
    """Unfolded f32 reference == the original PyTorch module's math."""
    p = params["_ref"]
    obs = jnp.dot(v, p["w_obs"]) + p["b_obs"]
    h = jnp.maximum(jnp.dot(v, p["w1"]) + p["b1"], 0.0)
    rep = jnp.dot(h, p["w2"]) + p["b2"]
    cls = jnp.dot(rep, p["w_cls"]) + p["b_cls"]
    return obs, cls


# ------------------------------------ main -----------------------------------
if __name__ == "__main__":
    key = jax.random.PRNGKey(0)
    kv, kp = jax.random.split(key)

    # Small, tile-friendly stand-ins for (in_ch=2048, num_class=395, dim_bottleneck=256)
    B, IN_CH, DIM_BOTTLENECK, NUM_CLASS = 8, 512, 128, 256

    v = jax.random.normal(kv, (B, IN_CH), jnp.float32)
    params = init_params(kp, IN_CH, DIM_BOTTLENECK, NUM_CLASS)

    out_obs, out_rep = fuse_bottleneck_forward(v, params)
    jax.block_until_ready((out_obs, out_rep))

    assert out_obs.shape == (B, NUM_CLASS)
    assert out_rep.shape == (B, NUM_CLASS)

    ref_obs, ref_rep = ref_forward(v, params)
    np.testing.assert_allclose(np.asarray(out_obs), np.asarray(ref_obs), rtol=2e-2, atol=2e-3)
    np.testing.assert_allclose(np.asarray(out_rep), np.asarray(ref_rep), rtol=2e-2, atol=2e-3)

    # TODO(synk): PyTorch's exact Linear default init (kaiming-uniform) is approximated
    # by uniform(+-1/sqrt(fan_in)); forward-pass semantics are unaffected.
    print("KERNEL_OK")
</pallas_src>

<mosaic_0001>
module attributes {stable_mosaic.version = 11 : i64} {
  func.func @_fuse_bottleneck_kernel(%arg0: i32, %arg1: memref<16x512xbf16, #tpu.memory_space<vmem>>, %arg2: memref<512x256xbf16, #tpu.memory_space<vmem>>, %arg3: memref<512x128xbf16, #tpu.memory_space<vmem>>, %arg4: memref<1x128xf32, #tpu.memory_space<vmem>>, %arg5: memref<128x256xbf16, #tpu.memory_space<vmem>>, %arg6: memref<1x512xf32, #tpu.memory_space<vmem>>, %arg7: memref<16x512xf32, #tpu.memory_space<vmem>>) attributes {dimension_semantics = [#tpu.dimension_semantics<parallel>], iteration_bounds = array<i64: 1>, scalar_prefetch = 0 : i64, scratch_operands = 0 : i64, tpu.core_type = #tpu.core_type<tc>, window_params = [{transform_indices = @transform_0, window_bounds = array<i64: 16, 512>}, {pipeline_mode = #tpu.pipeline_mode<synchronous>, transform_indices = @transform_1, window_bounds = array<i64: 512, 256>}, {pipeline_mode = #tpu.pipeline_mode<synchronous>, transform_indices = @transform_2, window_bounds = array<i64: 512, 128>}, {pipeline_mode = #tpu.pipeline_mode<synchronous>, transform_indices = @transform_3, window_bounds = array<i64: 1, 128>}, {pipeline_mode = #tpu.pipeline_mode<synchronous>, transform_indices = @transform_4, window_bounds = array<i64: 128, 256>}, {pipeline_mode = #tpu.pipeline_mode<synchronous>, transform_indices = @transform_5, window_bounds = array<i64: 1, 512>}, {transform_indices = @transform_6, window_bounds = array<i64: 16, 512>}]} {
    %c0 = arith.constant 0 : index
    %c0_0 = arith.constant 0 : index
    %0 = vector.load %arg1[%c0, %c0_0] : memref<16x512xbf16, #tpu.memory_space<vmem>>, vector<16x512xbf16>
    %c0_1 = arith.constant 0 : index
    %c0_2 = arith.constant 0 : index
    %1 = vector.load %arg2[%c0_1, %c0_2] : memref<512x256xbf16, #tpu.memory_space<vmem>>, vector<512x256xbf16>
    %cst = arith.constant dense<0.000000e+00> : vector<16x256xf32>
    %2 = tpu.matmul %0, %1, %cst {dimension_numbers = #tpu.dot_dimension_numbers<[1], [0], [0], [1], [0, 0, 1, 1], [], []>} : vector<16x512xbf16>, vector<512x256xbf16>, vector<16x256xf32> -> vector<16x256xf32>
    %c0_3 = arith.constant 0 : index
    %c0_4 = arith.constant 0 : index
    %3 = vector.load %arg3[%c0_3, %c0_4] : memref<512x128xbf16, #tpu.memory_space<vmem>>, vector<512x128xbf16>
    %cst_5 = arith.constant dense<0.000000e+00> : vector<16x128xf32>
    %4 = tpu.matmul %0, %3, %cst_5 {dimension_numbers = #tpu.dot_dimension_numbers<[1], [0], [0], [1], [0, 0, 1, 1], [], []>} : vector<16x512xbf16>, vector<512x128xbf16>, vector<16x128xf32> -> vector<16x128xf32>
    %c0_6 = arith.constant 0 : index
    %c0_7 = arith.constant 0 : index
    %5 = vector.load %arg4[%c0_6, %c0_7] : memref<1x128xf32, #tpu.memory_space<vmem>>, vector<1x128xf32>
    %6 = vector.broadcast %5 : vector<1x128xf32> to vector<16x128xf32>
    %7 = arith.addf %4, %6 : vector<16x128xf32>
    %cst_8 = arith.constant 0.000000e+00 : f32
    %8 = vector.broadcast %cst_8 : f32 to vector<16x128xf32>
    %9 = arith.maximumf %7, %8 : vector<16x128xf32>
    %10 = arith.truncf %9 : vector<16x128xf32> to vector<16x128xbf16>
    %c0_9 = arith.constant 0 : index
    %c0_10 = arith.constant 0 : index
    %11 = vector.load %arg5[%c0_9, %c0_10] : memref<128x256xbf16, #tpu.memory_space<vmem>>, vector<128x256xbf16>
    %cst_11 = arith.constant dense<0.000000e+00> : vector<16x256xf32>
    %12 = tpu.matmul %10, %11, %cst_11 {dimension_numbers = #tpu.dot_dimension_numbers<[1], [0], [0], [1], [0, 0, 1, 1], [], []>} : vector<16x128xbf16>, vector<128x256xbf16>, vector<16x256xf32> -> vector<16x256xf32>
    %c0_12 = arith.constant 0 : index
    %c0_13 = arith.constant 0 : index
    %13 = vector.load %arg6[%c0_12, %c0_13] : memref<1x512xf32, #tpu.memory_space<vmem>>, vector<1x256xf32>
    %14 = vector.broadcast %13 : vector<1x256xf32> to vector<16x256xf32>
    %15 = arith.addf %2, %14 : vector<16x256xf32>
    %c0_14 = arith.constant 0 : index
    %c0_15 = arith.constant 0 : index
    %16 = vector.load %arg7[%c0_14, %c0_15] : memref<16x512xf32, #tpu.memory_space<vmem>>, vector<16x256xf32>
    tpu.vector_store %arg7[%c0_14, %c0_15], %15 {strides = array<i32>} : memref<16x512xf32, #tpu.memory_space<vmem>>, vector<16x256xf32>,
    %c0_16 = arith.constant 0 : index
    %c256 = arith.constant 256 : index
    %17 = vector.load %arg6[%c0_16, %c256] : memref<1x512xf32, #tpu.memory_space<vmem>>, vector<1x256xf32>
    %18 = vector.broadcast %17 : vector<1x256xf32> to vector<16x256xf32>
    %19 = arith.addf %12, %18 : vector<16x256xf32>
    %c0_17 = arith.constant 0 : index
    %c256_18 = arith.constant 256 : index
    %20 = vector.load %arg7[%c0_17, %c256_18] : memref<16x512xf32, #tpu.memory_space<vmem>>, vector<16x256xf32>
    tpu.vector_store %arg7[%c0_17, %c256_18], %19 {strides = array<i32>} : memref<16x512xf32, #tpu.memory_space<vmem>>, vector<16x256xf32>,
    return
  }
  func.func @transform_0(%arg0: i32) -> (i32, i32) {
    %c0_i32 = arith.constant 0 : i32
    %c0_i32_0 = arith.constant 0 : i32
    return %arg0, %c0_i32 : i32, i32
  }
  func.func @transform_1(%arg0: i32) -> (i32, i32) {
    %c0_i32 = arith.constant 0 : i32
    %c0_i32_0 = arith.constant 0 : i32
    %c0_i32_1 = arith.constant 0 : i32
    return %c0_i32, %c0_i32_0 : i32, i32
  }
  func.func @transform_2(%arg0: i32) -> (i32, i32) {
    %c0_i32 = arith.constant 0 : i32
    %c0_i32_0 = arith.constant 0 : i32
    %c0_i32_1 = arith.constant 0 : i32
    return %c0_i32, %c0_i32_0 : i32, i32
  }
  func.func @transform_3(%arg0: i32) -> (i32, i32) {
    %c0_i32 = arith.constant 0 : i32
    %c0_i32_0 = arith.constant 0 : i32
    %c0_i32_1 = arith.constant 0 : i32
    return %c0_i32, %c0_i32_0 : i32, i32
  }
  func.func @transform_4(%arg0: i32) -> (i32, i32) {
    %c0_i32 = arith.constant 0 : i32
    %c0_i32_0 = arith.constant 0 : i32
    %c0_i32_1 = arith.constant 0 : i32
    return %c0_i32, %c0_i32_0 : i32, i32
  }
  func.func @transform_5(%arg0: i32) -> (i32, i32) {
    %c0_i32 = arith.constant 0 : i32
    %c0_i32_0 = arith.constant 0 : i32
    %c0_i32_1 = arith.constant 0 : i32
    return %c0_i32, %c0_i32_0 : i32, i32
  }
  func.func @transform_6(%arg0: i32) -> (i32, i32) {
    %c0_i32 = arith.constant 0 : i32
    %c0_i32_0 = arith.constant 0 : i32
    return %arg0, %c0_i32 : i32, i32
  }
}

</mosaic_0001>

<llo_original>
// kernel: tpu_custom_call.1
$region0: #{tpu_custom_call.1}
  #allocation0 [shape = 'u32[]', space=smem, size = 0x4, offset = 0x4, fixed_abs, tag = 'smem constant byte address 0x4 - core index']
  #allocation1 [shape = 'u32[72,128]{1,0:T(1,128)}', space=vmem, size = 0x9000, scoped, tag = 'internal scratch']
  %s0 = inlined_call_operand.hbm [shape: bf16[16,512], index: 0, kind: input, shape index: {}]
  %s1 = inlined_call_operand.hbm [shape: bf16[512,256], index: 1, kind: input, shape index: {}]
  %s2 = inlined_call_operand.hbm [shape: bf16[512,128], index: 2, kind: input, shape index: {}]
  %s3 = inlined_call_operand.hbm [shape: f32[1,128], index: 3, kind: input, shape index: {}]
  %s4 = inlined_call_operand.hbm [shape: bf16[128,256], index: 4, kind: input, shape index: {}]
  %s5 = inlined_call_operand.vmem [shape: f32[1,512], index: 5, kind: input, shape index: {}]
  %s6 = inlined_call_operand.hbm [shape: f32[16,512], index: 6, kind: output, shape index: {}]
  %s7 = sld [smem:[#allocation0]]
  $region54: #{tpu_custom_call.1} parent=0
    _
  %s9 = ssub.s32 1, %s7
  %s10 = scalar_select 0, %s9, %s7
  $region1: #{tpu_custom_call.1} parent=0
    #allocation2 [shape = 'u8[16384]{0}', space=vmem, size = 0x4000, scoped, tag = 'input window, operand 0, single buffered']
    #allocation3 [shape = 's32[1]{0}', space=sflag, size = 0x4, scoped, tag = 'scoped memory for tpu_custom_call.1']
    #allocation4 [shape = 's32[1]{0}', space=sflag, size = 0x4, scoped, tag = 'scoped memory for tpu_custom_call.1']
    #allocation5 [shape = 'u8[262144]{0}', space=vmem, size = 0x40000, scoped, tag = 'input window, operand 1, single buffered']
    #allocation6 [shape = 's32[1]{0}', space=sflag, size = 0x4, scoped, tag = 'scoped memory for tpu_custom_call.1']
    #allocation7 [shape = 'u8[131072]{0}', space=vmem, size = 0x20000, scoped, tag = 'input window, operand 2, single buffered']
    #allocation8 [shape = 'u8[512]{0}', space=vmem, size = 0x400, scoped, tag = 'input window, operand 3, single buffered']
    #allocation9 [shape = 's32[1]{0}', space=sflag, size = 0x4, scoped, tag = 'scoped memory for tpu_custom_call.1']
    #allocation10 [shape = 'u8[65536]{0}', space=vmem, size = 0x10000, scoped, tag = 'input window, operand 4, single buffered']
    #allocation11 [shape = 'u8[32768]{0}', space=vmem, size = 0x8000, scoped, tag = 'output window, operand 0, single buffered']
    %11 = vsyncpa [#allocation3], 0
    %12 = vsyncpa [#allocation6], 0
    %13 = vsyncpa [#allocation9], 0
    %14 = vsyncpa [#allocation4], 0
    // Predicated region
    $region2: #{tpu_custom_call.1} parent=1 // pred_check
      _
    $region3: #{tpu_custom_call.1} parent=1 // pred_check_branch
      %16 = sbr.rel (0) target = $region5
    $region4: #{tpu_custom_call.1} parent=1 // pred_region
      %18 = vsyncadd [#allocation3], 0
      %s19 = sshll.u32 %s0, 4
      %s20 = int_to_ptr.hbm [resolvable:$true] %s19
      %s21 = sshll.u32 [#allocation2], 4
      %s22 = int_to_ptr.vmem [resolvable:$true] %s21
      %27 = dma.hbm_to_vmem [thread:$0]  %s20, 512, %s22, [#allocation3], 256, 256, 16
    $region5: #{tpu_custom_call.1} parent=1 // pred_fallthru
      _
    // Predicated region
    $region6: #{tpu_custom_call.1} parent=1 // pred_check
      _
    $region7: #{tpu_custom_call.1} parent=1 // pred_check_branch
      %29 = sbr.rel (0) target = $region9
    $region8: #{tpu_custom_call.1} parent=1 // pred_region
      %31 = vsyncadd [#allocation6], 0
      %s32 = sshll.u32 %s1, 4
      %s33 = int_to_ptr.hbm [resolvable:$true] %s32
      %s34 = sshll.u32 [#allocation5], 4
      %s35 = int_to_ptr.vmem [resolvable:$true] %s34
      %40 = dma.hbm_to_vmem [thread:$0]  %s33, 8192, %s35, [#allocation6], 128, 128, 8
    $region9: #{tpu_custom_call.1} parent=1 // pred_fallthru
      _
    // Predicated region
    $region10: #{tpu_custom_call.1} parent=1 // pred_check
      _
    $region11: #{tpu_custom_call.1} parent=1 // pred_check_branch
      %42 = sbr.rel (0) target = $region13
    $region12: #{tpu_custom_call.1} parent=1 // pred_region
      %44 = vsyncadd [#allocation6], 0
      %s45 = sshll.u32 %s2, 4
      %s46 = int_to_ptr.hbm [resolvable:$true] %s45
      %s47 = sshll.u32 [#allocation7], 4
      %s48 = int_to_ptr.vmem [resolvable:$true] %s47
      %53 = dma.hbm_to_vmem [thread:$0]  %s46, 4096, %s48, [#allocation6], 64, 64, 4
    $region13: #{tpu_custom_call.1} parent=1 // pred_fallthru
      _
    // Predicated region
    $region14: #{tpu_custom_call.1} parent=1 // pred_check
      _
    $region15: #{tpu_custom_call.1} parent=1 // pred_check_branch
      %55 = sbr.rel (0) target = $region17
    $region16: #{tpu_custom_call.1} parent=1 // pred_region
      %57 = vsyncadd [#allocation9], 0
      %s59 = sshll.u32 %s3, 4
      %s60 = int_to_ptr.hbm [resolvable:$true] %s59
      %s61 = sshll.u32 [#allocation8], 4
      %s62 = int_to_ptr.vmem [resolvable:$true] %s61
      %64 = dma.hbm_to_vmem [thread:$0]  %s60, 16, %s62, [#allocation9]
    $region17: #{tpu_custom_call.1} parent=1 // pred_fallthru
      _
    // Predicated region
    $region18: #{tpu_custom_call.1} parent=1 // pred_check
      _
    $region19: #{tpu_custom_call.1} parent=1 // pred_check_branch
      %66 = sbr.rel (0) target = $region21
    $region20: #{tpu_custom_call.1} parent=1 // pred_region
      %68 = vsyncadd [#allocation9], 0
      %s69 = sshll.u32 %s4, 4
      %s70 = int_to_ptr.hbm [resolvable:$true] %s69
      %s71 = sshll.u32 [#allocation10], 4
      %s72 = int_to_ptr.vmem [resolvable:$true] %s71
      %77 = dma.hbm_to_vmem [thread:$0]  %s70, 2048, %s72, [#allocation9], 128, 128, 8
    $region21: #{tpu_custom_call.1} parent=1 // pred_fallthru
      _
    // Predicated region
    $region22: #{tpu_custom_call.1} parent=1 // pred_check
      _
    $region23: #{tpu_custom_call.1} parent=1 // pred_check_branch
      %79 = sbr.rel (0) target = $region25
    $region24: #{tpu_custom_call.1} parent=1 // pred_region
      _
    $region25: #{tpu_custom_call.1} parent=1 // pred_fallthru
      _
    // Predicated region
    $region26: #{tpu_custom_call.1} parent=1 // pred_check
      _
    $region27: #{tpu_custom_call.1} parent=1 // pred_check_branch
      %81 = sbr.rel (0) target = $region29
    $region28: #{tpu_custom_call.1} parent=1 // pred_region
      %83 = dma.done [#allocation3], 512
    $region29: #{tpu_custom_call.1} parent=1 // pred_fallthru
      _
    // Predicated region
    $region30: #{tpu_custom_call.1} parent=1 // pred_check
      _
    $region31: #{tpu_custom_call.1} parent=1 // pred_check_branch
      %85 = sbr.rel (0) target = $region33
    $region32: #{tpu_custom_call.1} parent=1 // pred_region
      %87 = dma.done [#allocation6], 8192
    $region33: #{tpu_custom_call.1} parent=1 // pred_fallthru
      _
    // Predicated region
    $region34: #{tpu_custom_call.1} parent=1 // pred_check
      _
    $region35: #{tpu_custom_call.1} parent=1 // pred_check_branch
      %89 = sbr.rel (0) target = $region37
    $region36: #{tpu_custom_call.1} parent=1 // pred_region
      %91 = dma.done [#allocation6], 4096
    $region37: #{tpu_custom_call.1} parent=1 // pred_fallthru
      _
    // Predicated region
    $region38: #{tpu_custom_call.1} parent=1 // pred_check
      _
    $region39: #{tpu_custom_call.1} parent=1 // pred_check_branch
      %93 = sbr.rel (0) target = $region41
    $region40: #{tpu_custom_call.1} parent=1 // pred_region
      %95 = dma.done [#allocation9], 16
    $region41: #{tpu_custom_call.1} parent=1 // pred_fallthru
      _
    // Predicated region
    $region42: #{tpu_custom_call.1} parent=1 // pred_check
      _
    $region43: #{tpu_custom_call.1} parent=1 // pred_check_branch
      %97 = sbr.rel (0) target = $region45
    $region44: #{tpu_custom_call.1} parent=1 // pred_region
      %99 = dma.done [#allocation9], 2048
    $region45: #{tpu_custom_call.1} parent=1 // pred_fallthru
      _
    %v100 = vld [vmem:[#allocation2] sm:$0xff]
    %v101 = vld [vmem:[#allocation2 + $0x8] sm:$0xff]
    %v102 = vld [vmem:[#allocation2 + $0x10] sm:$0xff]
    %v103 = vld [vmem:[#allocation2 + $0x18] sm:$0xff]
    %v104 = vld [vmem:[#allocation5] sm:$0xff]
    %v105 = vld [vmem:[#allocation5 + $0x8] sm:$0xff]
    %v106 = vld [vmem:[#allocation5 + $0x10] sm:$0xff]
    %v107 = vld [vmem:[#allocation5 + $0x18] sm:$0xff]
    %v108 = vld [vmem:[#allocation5 + $0x20] sm:$0xff]
    %v109 = vld [vmem:[#allocation5 + $0x28] sm:$0xff]
    %v110 = vld [vmem:[#allocation5 + $0x30] sm:$0xff]
    %v111 = vld [vmem:[#allocation5 + $0x38] sm:$0xff]
    %v112 = vld [vmem:[#allocation5 + $0x40] sm:$0xff]
    %v113 = vld [vmem:[#allocation5 + $0x48] sm:$0xff]
    %v114 = vld [vmem:[#allocation5 + $0x50] sm:$0xff]
    %v115 = vld [vmem:[#allocation5 + $0x58] sm:$0xff]
    %v116 = vld [vmem:[#allocation5 + $0x60] sm:$0xff]
    %v117 = vld [vmem:[#allocation5 + $0x68] sm:$0xff]
    %v118 = vld [vmem:[#allocation5 + $0x70] sm:$0xff]
    %v119 = vld [vmem:[#allocation5 + $0x78] sm:$0xff]
    %v120 = vld [vmem:[#allocation5 + $0x80] sm:$0xff]
    %v121 = vld [vmem:[#allocation5 + $0x88] sm:$0xff]
    %v122 = vld [vmem:[#allocation5 + $0x90] sm:$0xff]
    %v123 = vld [vmem:[#allocation5 + $0x98] sm:$0xff]
    %v124 = vld [vmem:[#allocation5 + $0xa0] sm:$0xff]
    %v125 = vld [vmem:[#allocation5 + $0xa8] sm:$0xff]
    %v126 = vld [vmem:[#allocation5 + $0xb0] sm:$0xff]
    %v127 = vld [vmem:[#allocation5 + $0xb8] sm:$0xff]
    %v128 = vld [vmem:[#allocation5 + $0xc0] sm:$0xff]
    %v129 = vld [vmem:[#allocation5 + $0xc8] sm:$0xff]
    %v130 = vld [vmem:[#allocation5 + $0xd0] sm:$0xff]
    %v131 = vld [vmem:[#allocation5 + $0xd8] sm:$0xff]
    %v132 = vld [vmem:[#allocation5 + $0xe0] sm:$0xff]
    %v133 = vld [vmem:[#allocation5 + $0xe8] sm:$0xff]
    %v134 = vld [vmem:[#allocation5 + $0xf0] sm:$0xff]
    %v135 = vld [vmem:[#allocation5 + $0xf8] sm:$0xff]
    %v136 = vld [vmem:[#allocation5 + $0x100] sm:$0xff]
    %v137 = vld [vmem:[#allocation5 + $0x108] sm:$0xff]
    %v138 = vld [vmem:[#allocation5 + $0x110] sm:$0xff]
    %v139 = vld [vmem:[#allocation5 + $0x118] sm:$0xff]
    %v140 = vld [vmem:[#allocation5 + $0x120] sm:$0xff]
    %v141 = vld [vmem:[#allocation5 + $0x128] sm:$0xff]
    %v142 = vld [vmem:[#allocation5 + $0x130] sm:$0xff]
    %v143 = vld [vmem:[#allocation5 + $0x138] sm:$0xff]
    %v144 = vld [vmem:[#allocation5 + $0x140] sm:$0xff]
    %v145 = vld [vmem:[#allocation5 + $0x148] sm:$0xff]
    %v146 = vld [vmem:[#allocation5 + $0x150] sm:$0xff]
    %v147 = vld [vmem:[#allocation5 + $0x158] sm:$0xff]
    %v148 = vld [vmem:[#allocation5 + $0x160] sm:$0xff]
    %v149 = vld [vmem:[#allocation5 + $0x168] sm:$0xff]
    %v150 = vld [vmem:[#allocation5 + $0x170] sm:$0xff]
    %v151 = vld [vmem:[#allocation5 + $0x178] sm:$0xff]
    %v152 = vld [vmem:[#allocation5 + $0x180] sm:$0xff]
    %v153 = vld [vmem:[#allocation5 + $0x188] sm:$0xff]
    %v154 = vld [vmem:[#allocation5 + $0x190] sm:$0xff]
    %v155 = vld [vmem:[#allocation5 + $0x198] sm:$0xff]
    %v156 = vld [vmem:[#allocation5 + $0x1a0] sm:$0xff]
    %v157 = vld [vmem:[#allocation5 + $0x1a8] sm:$0xff]
    %v158 = vld [vmem:[#allocation5 + $0x1b0] sm:$0xff]
    %v159 = vld [vmem:[#allocation5 + $0x1b8] sm:$0xff]
    %v160 = vld [vmem:[#allocation5 + $0x1c0] sm:$0xff]
    %v161 = vld [vmem:[#allocation5 + $0x1c8] sm:$0xff]
    %v162 = vld [vmem:[#allocation5 + $0x1d0] sm:$0xff]
    %v163 = vld [vmem:[#allocation5 + $0x1d8] sm:$0xff]
    %v164 = vld [vmem:[#allocation5 + $0x1e0] sm:$0xff]
    %v165 = vld [vmem:[#allocation5 + $0x1e8] sm:$0xff]
    %v166 = vld [vmem:[#allocation5 + $0x1f0] sm:$0xff]
    %v167 = vld [vmem:[#allocation5 + $0x1f8] sm:$0xff]
    %v168 = vld [vmem:[#allocation7] sm:$0xf]
    %v169 = vld [vmem:[#allocation7 + $0x4] sm:$0xf]
    %v170 = vld [vmem:[#allocation7 + $0x8] sm:$0xf]
    %v171 = vld [vmem:[#allocation7 + $0xc] sm:$0xf]
    %v172 = vld [vmem:[#allocation7 + $0x10] sm:$0xf]
    %v173 = vld [vmem:[#allocation7 + $0x14] sm:$0xf]
    %v174 = vld [vmem:[#allocation7 + $0x18] sm:$0xf]
    %v175 = vld [vmem:[#allocation7 + $0x1c] sm:$0xf]
    %v176 = vld [vmem:[#allocation7 + $0x20] sm:$0xf]
    %v177 = vld [vmem:[#allocation7 + $0x24] sm:$0xf]
    %v178 = vld [vmem:[#allocation7 + $0x28] sm:$0xf]
    %v179 = vld [vmem:[#allocation7 + $0x2c] sm:$0xf]
    %v180 = vld [vmem:[#allocation7 + $0x30] sm:$0xf]
    %v181 = vld [vmem:[#allocation7 + $0x34] sm:$0xf]
    %v182 = vld [vmem:[#allocation7 + $0x38] sm:$0xf]
    %v183 = vld [vmem:[#allocation7 + $0x3c] sm:$0xf]
    %v184 = vld [vmem:[#allocation7 + $0x40] sm:$0xf]
    %v185 = vld [vmem:[#allocation7 + $0x44] sm:$0xf]
    %v186 = vld [vmem:[#allocation7 + $0x48] sm:$0xf]
    %v187 = vld [vmem:[#allocation7 + $0x4c] sm:$0xf]
    %v188 = vld [vmem:[#allocation7 + $0x50] sm:$0xf]
    %v189 = vld [vmem:[#allocation7 + $0x54] sm:$0xf]
    %v190 = vld [vmem:[#allocation7 + $0x58] sm:$0xf]
    %v191 = vld [vmem:[#allocation7 + $0x5c] sm:$0xf]
    %v192 = vld [vmem:[#allocation7 + $0x60] sm:$0xf]
    %v193 = vld [vmem:[#allocation7 + $0x64] sm:$0xf]
    %v194 = vld [vmem:[#allocation7 + $0x68] sm:$0xf]
    %v195 = vld [vmem:[#allocation7 + $0x6c] sm:$0xf]
    %v196 = vld [vmem:[#allocation7 + $0x70] sm:$0xf]
    %v197 = vld [vmem:[#allocation7 + $0x74] sm:$0xf]
    %v198 = vld [vmem:[#allocation7 + $0x78] sm:$0xf]
    %v199 = vld [vmem:[#allocation7 + $0x7c] sm:$0xf]
    %v200 = vld [vmem:[#allocation7 + $0x80] sm:$0xf]
    %v201 = vld [vmem:[#allocation7 + $0x84] sm:$0xf]
    %v202 = vld [vmem:[#allocation7 + $0x88] sm:$0xf]
    %v203 = vld [vmem:[#allocation7 + $0x8c] sm:$0xf]
    %v204 = vld [vmem:[#allocation7 + $0x90] sm:$0xf]
    %v205 = vld [vmem:[#allocation7 + $0x94] sm:$0xf]
    %v206 = vld [vmem:[#allocation7 + $0x98] sm:$0xf]
    %v207 = vld [vmem:[#allocation7 + $0x9c] sm:$0xf]
    %v208 = vld [vmem:[#allocation7 + $0xa0] sm:$0xf]
    %v209 = vld [vmem:[#allocation7 + $0xa4] sm:$0xf]
    %v210 = vld [vmem:[#allocation7 + $0xa8] sm:$0xf]
    %v211 = vld [vmem:[#allocation7 + $0xac] sm:$0xf]
    %v212 = vld [vmem:[#allocation7 + $0xb0] sm:$0xf]
    %v213 = vld [vmem:[#allocation7 + $0xb4] sm:$0xf]
    %v214 = vld [vmem:[#allocation7 + $0xb8] sm:$0xf]
    %v215 = vld [vmem:[#allocation7 + $0xbc] sm:$0xf]
    %v216 = vld [vmem:[#allocation7 + $0xc0] sm:$0xf]
    %v217 = vld [vmem:[#allocation7 + $0xc4] sm:$0xf]
    %v218 = vld [vmem:[#allocation7 + $0xc8] sm:$0xf]
    %v219 = vld [vmem:[#allocation7 + $0xcc] sm:$0xf]
    %v220 = vld [vmem:[#allocation7 + $0xd0] sm:$0xf]
    %v221 = vld [vmem:[#allocation7 + $0xd4] sm:$0xf]
    %v222 = vld [vmem:[#allocation7 + $0xd8] sm:$0xf]
    %v223 = vld [vmem:[#allocation7 + $0xdc] sm:$0xf]
    %v224 = vld [vmem:[#allocation7 + $0xe0] sm:$0xf]
    %v225 = vld [vmem:[#allocation7 + $0xe4] sm:$0xf]
    %v226 = vld [vmem:[#allocation7 + $0xe8] sm:$0xf]
    %v227 = vld [vmem:[#allocation7 + $0xec] sm:$0xf]
    %v228 = vld [vmem:[#allocation7 + $0xf0] sm:$0xf]
    %v229 = vld [vmem:[#allocation7 + $0xf4] sm:$0xf]
    %v230 = vld [vmem:[#allocation7 + $0xf8] sm:$0xf]
    %v231 = vld [vmem:[#allocation7 + $0xfc] sm:$0xf]
    %v232 = vld [vmem:[#allocation8] sm:$0x1]
    %v234 = vperm.slane %v232, 0
    %v240 = vunpack.c.l.b16 %v100
    %v241 = vunpack.c.h.b16 %v100
    %v242 = vunpack.c.l.b16 %v101
    %v243 = vunpack.c.h.b16 %v101
    %v244 = vunpack.c.l.b16 %v102
    %v245 = vunpack.c.h.b16 %v102
    %v246 = vunpack.c.l.b16 %v103
    %v247 = vunpack.c.h.b16 %v103
    %v248 = vpack.c.b16 %v244, %v240
    %v249 = vpack.c.b16 %v245, %v241
    %v250 = vpack.c.b16 %v246, %v242
    %v251 = vpack.c.b16 %v247, %v243
    %v320 = vunpack.c.l.b16 %v168
    %v321 = vunpack.c.l.b16 %v169
    %v322 = vunpack.c.l.b16 %v170
    %v323 = vunpack.c.l.b16 %v171
    %v324 = vunpack.c.l.b16 %v172
    %v325 = vunpack.c.l.b16 %v173
    %v326 = vunpack.c.l.b16 %v174
    %v327 = vunpack.c.l.b16 %v175
    %v328 = vunpack.c.l.b16 %v176
    %v329 = vunpack.c.l.b16 %v177
    %v330 = vunpack.c.l.b16 %v178
    %v331 = vunpack.c.l.b16 %v179
    %v332 = vunpack.c.l.b16 %v180
    %v333 = vunpack.c.l.b16 %v181
    %v334 = vunpack.c.l.b16 %v182
    %v335 = vunpack.c.l.b16 %v183
    %v336 = vunpack.c.l.b16 %v184
    %v337 = vunpack.c.l.b16 %v185
    %v338 = vunpack.c.l.b16 %v186
    %v339 = vunpack.c.l.b16 %v187
    %v340 = vunpack.c.l.b16 %v188
    %v341 = vunpack.c.l.b16 %v189
    %v342 = vunpack.c.l.b16 %v190
    %v343 = vunpack.c.l.b16 %v191
    %v344 = vunpack.c.l.b16 %v192
    %v345 = vunpack.c.l.b16 %v193
    %v346 = vunpack.c.l.b16 %v194
    %v347 = vunpack.c.l.b16 %v195
    %v348 = vunpack.c.l.b16 %v196
    %v349 = vunpack.c.l.b16 %v197
    %v350 = vunpack.c.l.b16 %v198
    %v351 = vunpack.c.l.b16 %v199
    %v352 = vunpack.c.l.b16 %v200
    %v353 = vunpack.c.l.b16 %v201
    %v354 = vunpack.c.l.b16 %v202
    %v355 = vunpack.c.l.b16 %v203
    %v356 = vunpack.c.l.b16 %v204
    %v357 = vunpack.c.l.b16 %v205
    %v358 = vunpack.c.l.b16 %v206
    %v359 = vunpack.c.l.b16 %v207
    %v360 = vunpack.c.l.b16 %v208
    %v361 = vunpack.c.l.b16 %v209
    %v362 = vunpack.c.l.b16 %v210
    %v363 = vunpack.c.l.b16 %v211
    %v364 = vunpack.c.l.b16 %v212
    %v365 = vunpack.c.l.b16 %v213
    %v366 = vunpack.c.l.b16 %v214
    %v367 = vunpack.c.l.b16 %v215
    %v368 = vunpack.c.l.b16 %v216
    %v369 = vunpack.c.l.b16 %v217
    %v370 = vunpack.c.l.b16 %v218
    %v371 = vunpack.c.l.b16 %v219
    %v372 = vunpack.c.l.b16 %v220
    %v373 = vunpack.c.l.b16 %v221
    %v374 = vunpack.c.l.b16 %v222
    %v375 = vunpack.c.l.b16 %v223
    %v376 = vunpack.c.l.b16 %v224
    %v377 = vunpack.c.l.b16 %v225
    %v378 = vunpack.c.l.b16 %v226
    %v379 = vunpack.c.l.b16 %v227
    %v380 = vunpack.c.l.b16 %v228
    %v381 = vunpack.c.l.b16 %v229
    %v382 = vunpack.c.l.b16 %v230
    %v383 = vunpack.c.l.b16 %v231
    %v384 = vpack.c.b16 %v321, %v320
    %v385 = vpack.c.b16 %v323, %v322
    %v386 = vpack.c.b16 %v325, %v324
    %v387 = vpack.c.b16 %v327, %v326
    %v388 = vpack.c.b16 %v329, %v328
    %v389 = vpack.c.b16 %v331, %v330
    %v390 = vpack.c.b16 %v333, %v332
    %v391 = vpack.c.b16 %v335, %v334
    %v392 = vpack.c.b16 %v337, %v336
    %v393 = vpack.c.b16 %v339, %v338
    %v394 = vpack.c.b16 %v341, %v340
    %v395 = vpack.c.b16 %v343, %v342
    %v396 = vpack.c.b16 %v345, %v344
    %v397 = vpack.c.b16 %v347, %v346
    %v398 = vpack.c.b16 %v349, %v348
    %v399 = vpack.c.b16 %v351, %v350
    %v400 = vpack.c.b16 %v353, %v352
    %v401 = vpack.c.b16 %v355, %v354
    %v402 = vpack.c.b16 %v357, %v356
    %v403 = vpack.c.b16 %v359, %v358
    %v404 = vpack.c.b16 %v361, %v360
    %v405 = vpack.c.b16 %v363, %v362
    %v406 = vpack.c.b16 %v365, %v364
    %v407 = vpack.c.b16 %v367, %v366
    %v408 = vpack.c.b16 %v369, %v368
    %v409 = vpack.c.b16 %v371, %v370
    %v410 = vpack.c.b16 %v373, %v372
    %v411 = vpack.c.b16 %v375, %v374
    %v412 = vpack.c.b16 %v377, %v376
    %v413 = vpack.c.b16 %v379, %v378
    %v414 = vpack.c.b16 %v381, %v380
    %v415 = vpack.c.b16 %v383, %v382
    %448 = vmatpush.bf16.msra.mxu0 %v391
    %449 = vmatpush.bf16.msra.mxu0 %v390
    %450 = vmatpush.bf16.msra.mxu0 %v389
    %451 = vmatpush.bf16.msra.mxu0 %v388
    %452 = vmatpush.bf16.msra.mxu0 %v387
    %453 = vmatpush.bf16.msra.mxu0 %v386
    %454 = vmatpush.bf16.msra.mxu0 %v385
    %455 = vmatpush.bf16.msra.mxu0 %v384
    %456 = vmatmul.bf16.gmra.mxu0 %v248
    %v457 = vpop.f32.mrf.mxu0
    %v458 = vadd.f32 %v234, %v457
    %v459 = vpop.f32.mrf.mxu0
    %v460 = vadd.f32 %v234, %v459
    %461 = vdwg.mxu0
    %462 = vmatpush.bf16.msra.mxu0 %v399
    %463 = vmatpush.bf16.msra.mxu0 %v398
    %464 = vmatpush.bf16.msra.mxu0 %v397
    %465 = vmatpush.bf16.msra.mxu0 %v396
    %466 = vmatpush.bf16.msra.mxu0 %v395
    %467 = vmatpush.bf16.msra.mxu0 %v394
    %468 = vmatpush.bf16.msra.mxu0 %v393
    %469 = vmatpush.bf16.msra.mxu0 %v392
    %470 = vmatmul.bf16.gmra.mxu0 %v249
    %v471 = vpop.f32.mrf.mxu0
    %v472 = vadd.f32 %v458, %v471
    %v473 = vpop.f32.mrf.mxu0
    %v474 = vadd.f32 %v460, %v473
    %475 = vdwg.mxu0
    %476 = vmatpush.bf16.msra.mxu0 %v407
    %477 = vmatpush.bf16.msra.mxu0 %v406
    %478 = vmatpush.bf16.msra.mxu0 %v405
    %479 = vmatpush.bf16.msra.mxu0 %v404
    %480 = vmatpush.bf16.msra.mxu0 %v403
    %481 = vmatpush.bf16.msra.mxu0 %v402
    %482 = vmatpush.bf16.msra.mxu0 %v401
    %483 = vmatpush.bf16.msra.mxu0 %v400
    %484 = vmatmul.bf16.gmra.mxu0 %v250
    %v485 = vpop.f32.mrf.mxu0
    %v486 = vadd.f32 %v472, %v485
    %v487 = vpop.f32.mrf.mxu0
    %v488 = vadd.f32 %v474, %v487
    %489 = vdwg.mxu0
    %490 = vmatpush.bf16.msra.mxu0 %v415
    %491 = vmatpush.bf16.msra.mxu0 %v414
    %492 = vmatpush.bf16.msra.mxu0 %v413
    %493 = vmatpush.bf16.msra.mxu0 %v412
    %494 = vmatpush.bf16.msra.mxu0 %v411
    %495 = vmatpush.bf16.msra.mxu0 %v410
    %496 = vmatpush.bf16.msra.mxu0 %v409
    %497 = vmatpush.bf16.msra.mxu0 %v408
    %498 = vmatmul.bf16.gmra.mxu0 %v251
    %v499 = vpop.f32.mrf.mxu0
    %v500 = vadd.f32 %v486, %v499
    %v501 = vpop.f32.mrf.mxu0
    %v502 = vadd.f32 %v488, %v501
    %503 = vdwg.mxu0
    %v504 = vmax.f32 %v500, 0.0
    %v505 = vmax.f32 %v502, 0.0
    %v506 = vpack.c.bf16 %v505, %v504
    %v507 = vld [vmem:[#allocation10] sm:$0xff]
    %v508 = vld [vmem:[#allocation10 + $0x8] sm:$0xff]
    %v509 = vld [vmem:[#allocation10 + $0x10] sm:$0xff]
    %v510 = vld [vmem:[#allocation10 + $0x18] sm:$0xff]
    %v511 = vld [vmem:[#allocation10 + $0x20] sm:$0xff]
    %v512 = vld [vmem:[#allocation10 + $0x28] sm:$0xff]
    %v513 = vld [vmem:[#allocation10 + $0x30] sm:$0xff]
    %v514 = vld [vmem:[#allocation10 + $0x38] sm:$0xff]
    %v515 = vld [vmem:[#allocation10 + $0x40] sm:$0xff]
    %v516 = vld [vmem:[#allocation10 + $0x48] sm:$0xff]
    %v517 = vld [vmem:[#allocation10 + $0x50] sm:$0xff]
    %v518 = vld [vmem:[#allocation10 + $0x58] sm:$0xff]
    %v519 = vld [vmem:[#allocation10 + $0x60] sm:$0xff]
    %v520 = vld [vmem:[#allocation10 + $0x68] sm:$0xff]
    %v521 = vld [vmem:[#allocation10 + $0x70] sm:$0xff]
    %v522 = vld [vmem:[#allocation10 + $0x78] sm:$0xff]
    %v523 = vld [vmem:[%s5] sm:$0x3]
    %v525 = vperm.slane %v523, 0
    %v526 = vperm.slane %v523, 1
    %v593 = vunpack.c.l.b16 %v104
    %v594 = vunpack.c.h.b16 %v104
    %v595 = vunpack.c.l.b16 %v105
    %v596 = vunpack.c.h.b16 %v105
    %v597 = vunpack.c.l.b16 %v106
    %v598 = vunpack.c.h.b16 %v106
    %v599 = vunpack.c.l.b16 %v107
    %v600 = vunpack.c.h.b16 %v107
    %v601 = vunpack.c.l.b16 %v108
    %v602 = vunpack.c.h.b16 %v108
    %v603 = vunpack.c.l.b16 %v109
    %v604 = vunpack.c.h.b16 %v109
    %v605 = vunpack.c.l.b16 %v110
    %v606 = vunpack.c.h.b16 %v110
    %v607 = vunpack.c.l.b16 %v111
    %v608 = vunpack.c.h.b16 %v111
    %v609 = vunpack.c.l.b16 %v112
    %v610 = vunpack.c.h.b16 %v112
    %v611 = vunpack.c.l.b16 %v113
    %v612 = vunpack.c.h.b16 %v113
    %v613 = vunpack.c.l.b16 %v114
    %v614 = vunpack.c.h.b16 %v114
    %v615 = vunpack.c.l.b16 %v115
    %v616 = vunpack.c.h.b16 %v115
    %v617 = vunpack.c.l.b16 %v116
    %v618 = vunpack.c.h.b16 %v116
    %v619 = vunpack.c.l.b16 %v117
    %v620 = vunpack.c.h.b16 %v117
    %v621 = vunpack.c.l.b16 %v118
    %v622 = vunpack.c.h.b16 %v118
    %v623 = vunpack.c.l.b16 %v119
    %v624 = vunpack.c.h.b16 %v119
    %v625 = vunpack.c.l.b16 %v120
    %v626 = vunpack.c.h.b16 %v120
    %v627 = vunpack.c.l.b16 %v121
    %v628 = vunpack.c.h.b16 %v121
    %v629 = vunpack.c.l.b16 %v122
    %v630 = vunpack.c.h.b16 %v122
    %v631 = vunpack.c.l.b16 %v123
    %v632 = vunpack.c.h.b16 %v123
    %v633 = vunpack.c.l.b16 %v124
    %v634 = vunpack.c.h.b16 %v124
    %v635 = vunpack.c.l.b16 %v125
    %v636 = vunpack.c.h.b16 %v125
    %v637 = vunpack.c.l.b16 %v126
    %v638 = vunpack.c.h.b16 %v126
    %v639 = vunpack.c.l.b16 %v127
    %v640 = vunpack.c.h.b16 %v127
    %v641 = vunpack.c.l.b16 %v128
    %v642 = vunpack.c.h.b16 %v128
    %v643 = vunpack.c.l.b16 %v129
    %v644 = vunpack.c.h.b16 %v129
    %v645 = vunpack.c.l.b16 %v130
    %v646 = vunpack.c.h.b16 %v130
    %v647 = vunpack.c.l.b16 %v131
    %v648 = vunpack.c.h.b16 %v131
    %v649 = vunpack.c.l.b16 %v132
    %v650 = vunpack.c.h.b16 %v132
    %v651 = vunpack.c.l.b16 %v133
    %v652 = vunpack.c.h.b16 %v133
    %v653 = vunpack.c.l.b16 %v134
    %v654 = vunpack.c.h.b16 %v134
    %v655 = vunpack.c.l.b16 %v135
    %v656 = vunpack.c.h.b16 %v135
    %v657 = vunpack.c.l.b16 %v136
    %v658 = vunpack.c.h.b16 %v136
    %v659 = vunpack.c.l.b16 %v137
    %v660 = vunpack.c.h.b16 %v137
    %v661 = vunpack.c.l.b16 %v138
    %v662 = vunpack.c.h.b16 %v138
    %v663 = vunpack.c.l.b16 %v139
    %v664 = vunpack.c.h.b16 %v139
    %v665 = vunpack.c.l.b16 %v140
    %v666 = vunpack.c.h.b16 %v140
    %v667 = vunpack.c.l.b16 %v141
    %v668 = vunpack.c.h.b16 %v141
    %v669 = vunpack.c.l.b16 %v142
    %v670 = vunpack.c.h.b16 %v142
    %v671 = vunpack.c.l.b16 %v143
    %v672 = vunpack.c.h.b16 %v143
    %v673 = vunpack.c.l.b16 %v144
    %v674 = vunpack.c.h.b16 %v144
    %v675 = vunpack.c.l.b16 %v145
    %v676 = vunpack.c.h.b16 %v145
    %v677 = vunpack.c.l.b16 %v146
    %v678 = vunpack.c.h.b16 %v146
    %v679 = vunpack.c.l.b16 %v147
    %v680 = vunpack.c.h.b16 %v147
    %v681 = vunpack.c.l.b16 %v148
    %v682 = vunpack.c.h.b16 %v148
    %v683 = vunpack.c.l.b16 %v149
    %v684 = vunpack.c.h.b16 %v149
    %v685 = vunpack.c.l.b16 %v150
    %v686 = vunpack.c.h.b16 %v150
    %v687 = vunpack.c.l.b16 %v151
    %v688 = vunpack.c.h.b16 %v151
    %v689 = vunpack.c.l.b16 %v152
    %v690 = vunpack.c.h.b16 %v152
    %v691 = vunpack.c.l.b16 %v153
    %v692 = vunpack.c.h.b16 %v153
    %v693 = vunpack.c.l.b16 %v154
    %v694 = vunpack.c.h.b16 %v154
    %v695 = vunpack.c.l.b16 %v155
    %v696 = vunpack.c.h.b16 %v155
    %v697 = vunpack.c.l.b16 %v156
    %v698 = vunpack.c.h.b16 %v156
    %v699 = vunpack.c.l.b16 %v157
    %v700 = vunpack.c.h.b16 %v157
    %v701 = vunpack.c.l.b16 %v158
    %v702 = vunpack.c.h.b16 %v158
    %v703 = vunpack.c.l.b16 %v159
    %v704 = vunpack.c.h.b16 %v159
    %v705 = vunpack.c.l.b16 %v160
    %v706 = vunpack.c.h.b16 %v160
    %v707 = vunpack.c.l.b16 %v161
    %v708 = vunpack.c.h.b16 %v161
    %v709 = vunpack.c.l.b16 %v162
    %v710 = vunpack.c.h.b16 %v162
    %v711 = vunpack.c.l.b16 %v163
    %v712 = vunpack.c.h.b16 %v163
    %v713 = vunpack.c.l.b16 %v164
    %v714 = vunpack.c.h.b16 %v164
    %v715 = vunpack.c.l.b16 %v165
    %v716 = vunpack.c.h.b16 %v165
    %v717 = vunpack.c.l.b16 %v166
    %v718 = vunpack.c.h.b16 %v166
    %v719 = vunpack.c.l.b16 %v167
    %v720 = vunpack.c.h.b16 %v167
    %v721 = vpack.c.b16 %v595, %v593
    %v722 = vpack.c.b16 %v596, %v594
    %v723 = vpack.c.b16 %v599, %v597
    %v724 = vpack.c.b16 %v600, %v598
    %v725 = vpack.c.b16 %v603, %v601
    %v726 = vpack.c.b16 %v604, %v602
    %v727 = vpack.c.b16 %v607, %v605
    %v728 = vpack.c.b16 %v608, %v606
    %v729 = vpack.c.b16 %v611, %v609
    %v730 = vpack.c.b16 %v612, %v610
    %v731 = vpack.c.b16 %v615, %v613
    %v732 = vpack.c.b16 %v616, %v614
    %v733 = vpack.c.b16 %v619, %v617
    %v734 = vpack.c.b16 %v620, %v618
    %v735 = vpack.c.b16 %v623, %v621
    %v736 = vpack.c.b16 %v624, %v622
    %v737 = vpack.c.b16 %v627, %v625
    %v738 = vpack.c.b16 %v628, %v626
    %v739 = vpack.c.b16 %v631, %v629
    %v740 = vpack.c.b16 %v632, %v630
    %v741 = vpack.c.b16 %v635, %v633
    %v742 = vpack.c.b16 %v636, %v634
    %v743 = vpack.c.b16 %v639, %v637
    %v744 = vpack.c.b16 %v640, %v638
    %v745 = vpack.c.b16 %v643, %v641
    %v746 = vpack.c.b16 %v644, %v642
    %v747 = vpack.c.b16 %v647, %v645
    %v748 = vpack.c.b16 %v648, %v646
    %v749 = vpack.c.b16 %v651, %v649
    %v750 = vpack.c.b16 %v652, %v650
    %v751 = vpack.c.b16 %v655, %v653
    %v752 = vpack.c.b16 %v656, %v654
    %v753 = vpack.c.b16 %v659, %v657
    %v754 = vpack.c.b16 %v660, %v658
    %v755 = vpack.c.b16 %v663, %v661
    %v756 = vpack.c.b16 %v664, %v662
    %v757 = vpack.c.b16 %v667, %v665
    %v758 = vpack.c.b16 %v668, %v666
    %v759 = vpack.c.b16 %v671, %v669
    %v760 = vpack.c.b16 %v672, %v670
    %v761 = vpack.c.b16 %v675, %v673
    %v762 = vpack.c.b16 %v676, %v674
    %v763 = vpack.c.b16 %v679, %v677
    %v764 = vpack.c.b16 %v680, %v678
    %v765 = vpack.c.b16 %v683, %v681
    %v766 = vpack.c.b16 %v684, %v682
    %v767 = vpack.c.b16 %v687, %v685
    %v768 = vpack.c.b16 %v688, %v686
    %v769 = vpack.c.b16 %v691, %v689
    %v770 = vpack.c.b16 %v692, %v690
    %v771 = vpack.c.b16 %v695, %v693
    %v772 = vpack.c.b16 %v696, %v694
    %v773 = vpack.c.b16 %v699, %v697
    %v774 = vpack.c.b16 %v700, %v698
    %v775 = vpack.c.b16 %v703, %v701
    %v776 = vpack.c.b16 %v704, %v702
    %v777 = vpack.c.b16 %v707, %v705
    %v778 = vpack.c.b16 %v708, %v706
    %v779 = vpack.c.b16 %v711, %v709
    %v780 = vpack.c.b16 %v712, %v710
    %v781 = vpack.c.b16 %v715, %v713
    %v782 = vpack.c.b16 %v716, %v714
    %v783 = vpack.c.b16 %v719, %v717
    %v784 = vpack.c.b16 %v720, %v718
    %849 = vmatpush.bf16.msra.mxu0 %v735
    %850 = vmatpush.bf16.msra.mxu0 %v733
    %851 = vmatpush.bf16.msra.mxu0 %v731
    %852 = vmatpush.bf16.msra.mxu0 %v729
    %853 = vmatpush.bf16.msra.mxu0 %v727
    %854 = vmatpush.bf16.msra.mxu0 %v725
    %855 = vmatpush.bf16.msra.mxu0 %v723
    %856 = vmatpush.bf16.msra.mxu0 %v721
    %857 = vmatmul.bf16.gmra.mxu0 %v248
    %v858 = vpop.f32.mrf.mxu0
    %v859 = vadd.f32 %v525, %v858
    %v860 = vpop.f32.mrf.mxu0
    %v861 = vadd.f32 %v525, %v860
    %862 = vdwg.mxu0
    %863 = vmatpush.bf16.msra.mxu0 %v751
    %864 = vmatpush.bf16.msra.mxu0 %v749
    %865 = vmatpush.bf16.msra.mxu0 %v747
    %866 = vmatpush.bf16.msra.mxu0 %v745
    %867 = vmatpush.bf16.msra.mxu0 %v743
    %868 = vmatpush.bf16.msra.mxu0 %v741
    %869 = vmatpush.bf16.msra.mxu0 %v739
    %870 = vmatpush.bf16.msra.mxu0 %v737
    %871 = vmatmul.bf16.gmra.mxu0 %v249
    %v872 = vpop.f32.mrf.mxu0
    %v873 = vadd.f32 %v859, %v872
    %v874 = vpop.f32.mrf.mxu0
    %v875 = vadd.f32 %v861, %v874
    %876 = vdwg.mxu0
    %877 = vmatpush.bf16.msra.mxu0 %v767
    %878 = vmatpush.bf16.msra.mxu0 %v765
    %879 = vmatpush.bf16.msra.mxu0 %v763
    %880 = vmatpush.bf16.msra.mxu0 %v761
    %881 = vmatpush.bf16.msra.mxu0 %v759
    %882 = vmatpush.bf16.msra.mxu0 %v757
    %883 = vmatpush.bf16.msra.mxu0 %v755
    %884 = vmatpush.bf16.msra.mxu0 %v753
    %885 = vmatmul.bf16.gmra.mxu0 %v250
    %v886 = vpop.f32.mrf.mxu0
    %v887 = vadd.f32 %v873, %v886
    %v888 = vpop.f32.mrf.mxu0
    %v889 = vadd.f32 %v875, %v888
    %890 = vdwg.mxu0
    %891 = vmatpush.bf16.msra.mxu0 %v783
    %892 = vmatpush.bf16.msra.mxu0 %v781
    %893 = vmatpush.bf16.msra.mxu0 %v779
    %894 = vmatpush.bf16.msra.mxu0 %v777
    %895 = vmatpush.bf16.msra.mxu0 %v775
    %896 = vmatpush.bf16.msra.mxu0 %v773
    %897 = vmatpush.bf16.msra.mxu0 %v771
    %898 = vmatpush.bf16.msra.mxu0 %v769
    %899 = vmatmul.bf16.gmra.mxu0 %v251
    %v900 = vpop.f32.mrf.mxu0
    %v901 = vadd.f32 %v887, %v900
    %v902 = vpop.f32.mrf.mxu0
    %v903 = vadd.f32 %v889, %v902
    %904 = vdwg.mxu0
    %905 = vmatpush.bf16.msra.mxu0 %v736
    %906 = vmatpush.bf16.msra.mxu0 %v734
    %907 = vmatpush.bf16.msra.mxu0 %v732
    %908 = vmatpush.bf16.msra.mxu0 %v730
    %909 = vmatpush.bf16.msra.mxu0 %v728
    %910 = vmatpush.bf16.msra.mxu0 %v726
    %911 = vmatpush.bf16.msra.mxu0 %v724
    %912 = vmatpush.bf16.msra.mxu0 %v722
    %913 = vmatmul.bf16.gmra.mxu0 %v248
    %v914 = vpop.f32.mrf.mxu0
    %v915 = vadd.f32 %v526, %v914
    %v916 = vpop.f32.mrf.mxu0
    %v917 = vadd.f32 %v526, %v916
    %918 = vdwg.mxu0
    %919 = vmatpush.bf16.msra.mxu0 %v752
    %920 = vmatpush.bf16.msra.mxu0 %v750
    %921 = vmatpush.bf16.msra.mxu0 %v748
    %922 = vmatpush.bf16.msra.mxu0 %v746
    %923 = vmatpush.bf16.msra.mxu0 %v744
    %924 = vmatpush.bf16.msra.mxu0 %v742
    %925 = vmatpush.bf16.msra.mxu0 %v740
    %926 = vmatpush.bf16.msra.mxu0 %v738
    %927 = vmatmul.bf16.gmra.mxu0 %v249
    %v928 = vpop.f32.mrf.mxu0
    %v929 = vadd.f32 %v915, %v928
    %v930 = vpop.f32.mrf.mxu0
    %v931 = vadd.f32 %v917, %v930
    %932 = vdwg.mxu0
    %933 = vmatpush.bf16.msra.mxu0 %v768
    %934 = vmatpush.bf16.msra.mxu0 %v766
    %935 = vmatpush.bf16.msra.mxu0 %v764
    %936 = vmatpush.bf16.msra.mxu0 %v762
    %937 = vmatpush.bf16.msra.mxu0 %v760
    %938 = vmatpush.bf16.msra.mxu0 %v758
    %939 = vmatpush.bf16.msra.mxu0 %v756
    %940 = vmatpush.bf16.msra.mxu0 %v754
    %941 = vmatmul.bf16.gmra.mxu0 %v250
    %v942 = vpop.f32.mrf.mxu0
    %v943 = vadd.f32 %v929, %v942
    %v944 = vpop.f32.mrf.mxu0
    %v945 = vadd.f32 %v931, %v944
    %946 = vdwg.mxu0
    %947 = vmatpush.bf16.msra.mxu0 %v784
    %948 = vmatpush.bf16.msra.mxu0 %v782
    %949 = vmatpush.bf16.msra.mxu0 %v780
    %950 = vmatpush.bf16.msra.mxu0 %v778
    %951 = vmatpush.bf16.msra.mxu0 %v776
    %952 = vmatpush.bf16.msra.mxu0 %v774
    %953 = vmatpush.bf16.msra.mxu0 %v772
    %954 = vmatpush.bf16.msra.mxu0 %v770
    %955 = vmatmul.bf16.gmra.mxu0 %v251
    %v956 = vpop.f32.mrf.mxu0
    %v957 = vadd.f32 %v943, %v956
    %v958 = vpop.f32.mrf.mxu0
    %v959 = vadd.f32 %v945, %v958
    %960 = vdwg.mxu0
    %961 = vst [vmem:[#allocation11] sm:$0xff] %v901
    %962 = vst [vmem:[#allocation11 + $0x8] sm:$0xff] %v957
    %963 = vst [vmem:[#allocation11 + $0x20] sm:$0xff] %v903
    %964 = vst [vmem:[#allocation11 + $0x28] sm:$0xff] %v959
    %v965 = vld [vmem:[%s5 + $0x2] sm:$0x3]
    %v967 = vperm.slane %v965, 0
    %v968 = vperm.slane %v965, 1
    %v987 = vunpack.c.l.b16 %v507
    %v988 = vunpack.c.h.b16 %v507
    %v989 = vunpack.c.l.b16 %v508
    %v990 = vunpack.c.h.b16 %v508
    %v991 = vunpack.c.l.b16 %v509
    %v992 = vunpack.c.h.b16 %v509
    %v993 = vunpack.c.l.b16 %v510
    %v994 = vunpack.c.h.b16 %v510
    %v995 = vunpack.c.l.b16 %v511
    %v996 = vunpack.c.h.b16 %v511
    %v997 = vunpack.c.l.b16 %v512
    %v998 = vunpack.c.h.b16 %v512
    %v999 = vunpack.c.l.b16 %v513
    %v1000 = vunpack.c.h.b16 %v513
    %v1001 = vunpack.c.l.b16 %v514
    %v1002 = vunpack.c.h.b16 %v514
    %v1003 = vunpack.c.l.b16 %v515
    %v1004 = vunpack.c.h.b16 %v515
    %v1005 = vunpack.c.l.b16 %v516
    %v1006 = vunpack.c.h.b16 %v516
    %v1007 = vunpack.c.l.b16 %v517
    %v1008 = vunpack.c.h.b16 %v517
    %v1009 = vunpack.c.l.b16 %v518
    %v1010 = vunpack.c.h.b16 %v518
    %v1011 = vunpack.c.l.b16 %v519
    %v1012 = vunpack.c.h.b16 %v519
    %v1013 = vunpack.c.l.b16 %v520
    %v1014 = vunpack.c.h.b16 %v520
    %v1015 = vunpack.c.l.b16 %v521
    %v1016 = vunpack.c.h.b16 %v521
    %v1017 = vunpack.c.l.b16 %v522
    %v1018 = vunpack.c.h.b16 %v522
    %v1019 = vpack.c.b16 %v989, %v987
    %v1020 = vpack.c.b16 %v990, %v988
    %v1021 = vpack.c.b16 %v993, %v991
    %v1022 = vpack.c.b16 %v994, %v992
    %v1023 = vpack.c.b16 %v997, %v995
    %v1024 = vpack.c.b16 %v998, %v996
    %v1025 = vpack.c.b16 %v1001, %v999
    %v1026 = vpack.c.b16 %v1002, %v1000
    %v1027 = vpack.c.b16 %v1005, %v1003
    %v1028 = vpack.c.b16 %v1006, %v1004
    %v1029 = vpack.c.b16 %v1009, %v1007
    %v1030 = vpack.c.b16 %v1010, %v1008
    %v1031 = vpack.c.b16 %v1013, %v1011
    %v1032 = vpack.c.b16 %v1014, %v1012
    %v1033 = vpack.c.b16 %v1017, %v1015
    %v1034 = vpack.c.b16 %v1018, %v1016
    %1051 = vmatpush.bf16.msra.mxu0 %v1033
    %1052 = vmatpush.bf16.msra.mxu0 %v1031
    %1053 = vmatpush.bf16.msra.mxu0 %v1029
    %1054 = vmatpush.bf16.msra.mxu0 %v1027
    %1055 = vmatpush.bf16.msra.mxu0 %v1025
    %1056 = vmatpush.bf16.msra.mxu0 %v1023
    %1057 = vmatpush.bf16.msra.mxu0 %v1021
    %1058 = vmatpush.bf16.msra.mxu0 %v1019
    %1059 = vmatmul.bf16.gmra.mxu0 %v506
    %v1060 = vpop.f32.mrf.mxu0
    %v1061 = vadd.f32 %v967, %v1060
    %v1062 = vpop.f32.mrf.mxu0
    %v1063 = vadd.f32 %v967, %v1062
    %1064 = vdwg.mxu0
    %1065 = vmatpush.bf16.msra.mxu0 %v1034
    %1066 = vmatpush.bf16.msra.mxu0 %v1032
    %1067 = vmatpush.bf16.msra.mxu0 %v1030
    %1068 = vmatpush.bf16.msra.mxu0 %v1028
    %1069 = vmatpush.bf16.msra.mxu0 %v1026
    %1070 = vmatpush.bf16.msra.mxu0 %v1024
    %1071 = vmatpush.bf16.msra.mxu0 %v1022
    %1072 = vmatpush.bf16.msra.mxu0 %v1020
    %1073 = vmatmul.bf16.gmra.mxu0 %v506
    %v1074 = vpop.f32.mrf.mxu0
    %v1075 = vadd.f32 %v968, %v1074
    %v1076 = vpop.f32.mrf.mxu0
    %v1077 = vadd.f32 %v968, %v1076
    %1078 = vdwg.mxu0
    %1079 = vst [vmem:[#allocation11 + $0x10] sm:$0xff] %v1061
    %1080 = vst [vmem:[#allocation11 + $0x18] sm:$0xff] %v1075
    %1081 = vst [vmem:[#allocation11 + $0x30] sm:$0xff] %v1063
    %1082 = vst [vmem:[#allocation11 + $0x38] sm:$0xff] %v1077
    // Predicated region
    $region46: #{tpu_custom_call.1} parent=1 // pred_check
      _
    $region47: #{tpu_custom_call.1} parent=1 // pred_check_branch
      %1084 = sbr.rel (0) target = $region49
    $region48: #{tpu_custom_call.1} parent=1 // pred_region
      %1086 = vsyncadd [#allocation4], 0
      %s1087 = sshll.u32 [#allocation11], 4
      %s1088 = int_to_ptr.vmem [resolvable:$true] %s1087
      %s1089 = sshll.u32 %s6, 4
      %s1090 = int_to_ptr.hbm [resolvable:$true] %s1089
      %1095 = dma.vmem_to_hbm [thread:$0]  %s1088, 1024, %s1090, [#allocation4], 512, 512, 32
    $region49: #{tpu_custom_call.1} parent=1 // pred_fallthru
      _
    // Predicated region
    $region50: #{tpu_custom_call.1} parent=1 // pred_check
      _
    $region51: #{tpu_custom_call.1} parent=1 // pred_check_branch
      %1097 = sbr.rel (0) target = $region53
    $region52: #{tpu_custom_call.1} parent=1 // pred_region
      %1099 = dma.done [#allocation4], 1024
    $region53: #{tpu_custom_call.1} parent=1 // pred_fallthru
      _
    %1100 = vsyncpa [#allocation3], 1
    %1101 = vsyncpa [#allocation6], 1
    %1102 = vsyncpa [#allocation9], 1
    %1103 = vsyncpa [#allocation4], 1

</llo_original>
